<compile_context>
chip_gen: v7x
topology: tpu7x:2x2x1
jax: 0.10.0
libtpu: 0.0.40
codegen_flags: <defaults>
</compile_context>

<pallas_src>
import functools

import jax
import jax.numpy as jnp
from jax import lax
from jax.experimental import pallas as pl
from jax.experimental.pallas import tpu as pltpu

EPS = 1e-12  # kept for parity with the PyTorch module (unused in forward)


def _contrastive_elementwise_kernel(margin, dist_ref, same_ref, loss_ref):
    d = dist_ref[...].astype(jnp.float32)
    s = same_ref[...].astype(jnp.float32)
    hinge = jnp.maximum(margin - d, 0.0)
    loss_ref[...] = s * d * d + (1.0 - s) * hinge * hinge


def _contrastive_batchmean_kernel(margin, inv_b, batch, tile_b, need_mask,
                                  dist_ref, same_ref, out_ref):
    b = pl.program_id(1)  # reduction axis (last grid axis)

    @pl.when(b == 0)
    def _():
        out_ref[...] = jnp.zeros_like(out_ref)

    d = dist_ref[...].astype(jnp.float32)
    s = same_ref[...].astype(jnp.float32)
    hinge = jnp.maximum(margin - d, 0.0)
    loss = s * d * d + (1.0 - s) * hinge * hinge

    if need_mask:
        # Rows beyond the true batch size exist only in the ragged last batch
        # tile; zero them so padding never contaminates the sum.
        row = b * tile_b + lax.broadcasted_iota(jnp.int32, loss.shape, 0)
        loss = jnp.where(row < batch, loss, 0.0)

    out_ref[...] += jnp.sum(loss, axis=0, keepdims=True)

    @pl.when(b == pl.num_programs(1) - 1)
    def _():
        out_ref[...] *= inv_b  # apply 1/B once, on the final reduction step


def _round_up(x, m):
    return ((x + m - 1) // m) * m


def contrastive_loss(distance, is_same, margin=1.0, batch_mean=True,
                     tile_n=1024, tile_b=256):
    """Pallas implementation of ContrastiveLoss.forward.

    distance, is_same: (B, *) arrays. Returns the trailing shape if batch_mean
    else (B, *trailing).
    """
    orig_trailing = distance.shape[1:]
    B = distance.shape[0]
    d2 = distance.reshape(B, -1)   # keep native dtype; cast happens in-kernel
    s2 = is_same.reshape(B, -1)
    N = d2.shape[1]

    tn = min(tile_n, _round_up(N, 128))   # lane-aligned, multiple of 128
    tb = min(tile_b, _round_up(B, 8))     # sublane-aligned, multiple of 8
    n_tiles = pl.cdiv(N, tn)
    b_tiles = pl.cdiv(B, tb)

    if batch_mean:
        need_mask = (B % tb) != 0
        kernel = functools.partial(
            _contrastive_batchmean_kernel,
            float(margin), float(1.0 / B), int(B), int(tb), bool(need_mask),
        )
        out = pl.pallas_call(
            kernel,
            out_shape=jax.ShapeDtypeStruct((1, N), jnp.float32),
            grid=(n_tiles, b_tiles),  # reduction (batch) axis last
            in_specs=[
                pl.BlockSpec((tb, tn), lambda j, b: (b, j)),
                pl.BlockSpec((tb, tn), lambda j, b: (b, j)),
            ],
            out_specs=pl.BlockSpec((1, tn), lambda j, b: (0, j)),
            compiler_params=pltpu.CompilerParams(
                dimension_semantics=("parallel", "arbitrary")
            ),
        )(d2, s2)
        out = out[0]
        return out.reshape(orig_trailing) if orig_trailing else out.reshape(())
    else:
        kernel = functools.partial(_contrastive_elementwise_kernel, float(margin))
        out = pl.pallas_call(
            kernel,
            out_shape=jax.ShapeDtypeStruct((B, N), jnp.float32),
            grid=(b_tiles, n_tiles),
            in_specs=[
                pl.BlockSpec((tb, tn), lambda i, j: (i, j)),
                pl.BlockSpec((tb, tn), lambda i, j: (i, j)),
            ],
            out_specs=pl.BlockSpec((tb, tn), lambda i, j: (i, j)),
            compiler_params=pltpu.CompilerParams(
                dimension_semantics=("parallel", "parallel")
            ),
        )(d2, s2)
        return out.reshape((B,) + orig_trailing)


def _reference(distance, is_same, margin=1.0, batch_mean=True):
    d = distance.astype(jnp.float32)
    s = is_same.astype(jnp.float32)
    loss = s * d**2 + (1.0 - s) * jnp.maximum(margin - d, 0.0) ** 2
    if batch_mean:
        loss = loss.mean(axis=0)
    return loss


if __name__ == "__main__":
    key = jax.random.PRNGKey(0)
    k1, k2, k3, k4 = jax.random.split(key, 4)

    # --- Test 1 & 2: B=8, ragged feature count (4*37 = 148, not 128-aligned) ---
    B, trailing = 8, (4, 37)
    distance = jax.random.uniform(k1, (B,) + trailing, dtype=jnp.float32,
                                  minval=0.0, maxval=2.0)
    is_same = (jax.random.uniform(k2, (B,) + trailing) > 0.5).astype(jnp.float32)

    out_mean = jax.block_until_ready(
        contrastive_loss(distance, is_same, margin=1.0, batch_mean=True))
    ref_mean = _reference(distance, is_same, margin=1.0, batch_mean=True)
    assert out_mean.shape == trailing
    assert jnp.allclose(out_mean, ref_mean, atol=1e-5, rtol=1e-5)

    out_full = jax.block_until_ready(
        contrastive_loss(distance, is_same, margin=1.0, batch_mean=False))
    ref_full = _reference(distance, is_same, margin=1.0, batch_mean=False)
    assert out_full.shape == (B,) + trailing
    assert jnp.allclose(out_full, ref_full, atol=1e-5, rtol=1e-5)

    # --- Test 3: batch not a multiple of 8 (exercises in-kernel row mask) ---
    B2, trailing2 = 6, (5, 32)
    distance2 = jax.random.uniform(k3, (B2,) + trailing2, dtype=jnp.float32,
                                   minval=0.0, maxval=2.0)
    is_same2 = (jax.random.uniform(k4, (B2,) + trailing2) > 0.5).astype(jnp.float32)

    out_mean2 = jax.block_until_ready(
        contrastive_loss(distance2, is_same2, margin=0.75, batch_mean=True))
    ref_mean2 = _reference(distance2, is_same2, margin=0.75, batch_mean=True)
    assert out_mean2.shape == trailing2
    assert jnp.allclose(out_mean2, ref_mean2, atol=1e-5, rtol=1e-5)

    # --- Test 4: bf16 inputs, batch_mean=True (in-kernel cast path) ---
    distance3 = distance.astype(jnp.bfloat16)
    is_same3 = is_same.astype(jnp.bfloat16)
    out_mean3 = jax.block_until_ready(
        contrastive_loss(distance3, is_same3, margin=1.0, batch_mean=True))
    ref_mean3 = _reference(distance3, is_same3, margin=1.0, batch_mean=True)
    assert jnp.allclose(out_mean3, ref_mean3, atol=1e-2, rtol=1e-2)

    print("KERNEL_OK")
</pallas_src>

<mosaic_0001>
module attributes {stable_mosaic.version = 11 : i64} {
  func.func @_contrastive_batchmean_kernel(%arg0: i32, %arg1: i32, %arg2: memref<8x256xf32, #tpu.memory_space<vmem>>, %arg3: memref<8x256xf32, #tpu.memory_space<vmem>>, %arg4: memref<1x256xf32, #tpu.memory_space<vmem>>) attributes {dimension_semantics = [#tpu.dimension_semantics<parallel>, #tpu.dimension_semantics<arbitrary>], iteration_bounds = array<i64: 1, 1>, scalar_prefetch = 0 : i64, scratch_operands = 0 : i64, tpu.core_type = #tpu.core_type<tc>, window_params = [{transform_indices = @transform_0, window_bounds = array<i64: 8, 256>}, {transform_indices = @transform_1, window_bounds = array<i64: 8, 256>}, {transform_indices = @transform_2, window_bounds = array<i64: 1, 256>}]} {
    %c0_i32 = arith.constant 0 : i32
    %0 = arith.cmpi eq, %arg1, %c0_i32 : i32
    %1 = arith.extui %0 : i1 to i32
    %c0_i32_0 = arith.constant 0 : i32
    %2 = arith.cmpi ne, %1, %c0_i32_0 : i32
    scf.if %2 {
      %cst_13 = arith.constant 0.000000e+00 : f32
      %24 = vector.broadcast %cst_13 : f32 to vector<1x256xf32>
      %c0_14 = arith.constant 0 : index
      %c0_15 = arith.constant 0 : index
      %25 = vector.load %arg4[%c0_14, %c0_15] : memref<1x256xf32, #tpu.memory_space<vmem>>, vector<1x256xf32>
      tpu.vector_store %arg4[%c0_14, %c0_15], %24 {strides = array<i32>} : memref<1x256xf32, #tpu.memory_space<vmem>>, vector<1x256xf32>,
    } else {
    }
    %c0 = arith.constant 0 : index
    %c0_1 = arith.constant 0 : index
    %3 = vector.load %arg2[%c0, %c0_1] : memref<8x256xf32, #tpu.memory_space<vmem>>, vector<8x256xf32>
    %c0_2 = arith.constant 0 : index
    %c0_3 = arith.constant 0 : index
    %4 = vector.load %arg3[%c0_2, %c0_3] : memref<8x256xf32, #tpu.memory_space<vmem>>, vector<8x256xf32>
    %cst = arith.constant 1.000000e+00 : f32
    %5 = vector.broadcast %cst : f32 to vector<8x256xf32>
    %6 = arith.subf %5, %3 : vector<8x256xf32>
    %cst_4 = arith.constant 0.000000e+00 : f32
    %7 = vector.broadcast %cst_4 : f32 to vector<8x256xf32>
    %8 = arith.maximumf %6, %7 : vector<8x256xf32>
    %9 = arith.mulf %4, %3 : vector<8x256xf32>
    %10 = arith.mulf %9, %3 : vector<8x256xf32>
    %cst_5 = arith.constant 1.000000e+00 : f32
    %11 = vector.broadcast %cst_5 : f32 to vector<8x256xf32>
    %12 = arith.subf %11, %4 : vector<8x256xf32>
    %13 = arith.mulf %12, %8 : vector<8x256xf32>
    %14 = arith.mulf %13, %8 : vector<8x256xf32>
    %15 = arith.addf %10, %14 : vector<8x256xf32>
    %c0_6 = arith.constant 0 : index
    %c0_7 = arith.constant 0 : index
    %16 = vector.load %arg4[%c0_6, %c0_7] : memref<1x256xf32, #tpu.memory_space<vmem>>, vector<1x256xf32>
    %cst_8 = arith.constant dense<0.000000e+00> : vector<256xf32>
    %17 = vector.multi_reduction <add>, %15, %cst_8 [0] : vector<8x256xf32> to vector<256xf32>
    %18 = vector.shape_cast %17 : vector<256xf32> to vector<1x256xf32>
    %19 = arith.addf %16, %18 : vector<1x256xf32>
    %c0_9 = arith.constant 0 : index
    %c0_10 = arith.constant 0 : index
    %20 = vector.load %arg4[%c0_9, %c0_10] : memref<1x256xf32, #tpu.memory_space<vmem>>, vector<1x256xf32>
    tpu.vector_store %arg4[%c0_9, %c0_10], %19 {strides = array<i32>} : memref<1x256xf32, #tpu.memory_space<vmem>>, vector<1x256xf32>,
    %c0_i32_11 = arith.constant 0 : i32
    %21 = arith.cmpi eq, %arg1, %c0_i32_11 : i32
    %22 = arith.extui %21 : i1 to i32
    %c0_i32_12 = arith.constant 0 : i32
    %23 = arith.cmpi ne, %22, %c0_i32_12 : i32
    scf.if %23 {
      %c0_13 = arith.constant 0 : index
      %c0_14 = arith.constant 0 : index
      %24 = vector.load %arg4[%c0_13, %c0_14] : memref<1x256xf32, #tpu.memory_space<vmem>>, vector<1x256xf32>
      %cst_15 = arith.constant 1.250000e-01 : f32
      %25 = vector.broadcast %cst_15 : f32 to vector<1x256xf32>
      %26 = arith.mulf %24, %25 : vector<1x256xf32>
      %c0_16 = arith.constant 0 : index
      %c0_17 = arith.constant 0 : index
      %27 = vector.load %arg4[%c0_16, %c0_17] : memref<1x256xf32, #tpu.memory_space<vmem>>, vector<1x256xf32>
      tpu.vector_store %arg4[%c0_16, %c0_17], %26 {strides = array<i32>} : memref<1x256xf32, #tpu.memory_space<vmem>>, vector<1x256xf32>,
    } else {
    }
    return
  }
  func.func @transform_0(%arg0: i32, %arg1: i32) -> (i32, i32) {
    %c0_i32 = arith.constant 0 : i32
    return %arg1, %arg0 : i32, i32
  }
  func.func @transform_1(%arg0: i32, %arg1: i32) -> (i32, i32) {
    %c0_i32 = arith.constant 0 : i32
    return %arg1, %arg0 : i32, i32
  }
  func.func @transform_2(%arg0: i32, %arg1: i32) -> (i32, i32) {
    %c0_i32 = arith.constant 0 : i32
    %c0_i32_0 = arith.constant 0 : i32
    return %c0_i32, %arg0 : i32, i32
  }
}

</mosaic_0001>

<llo_original>
// kernel: tpu_custom_call.1
$region0: #{tpu_custom_call.1}
  #allocation0 [shape = 'u32[]', space=smem, size = 0x4, offset = 0x4, fixed_abs, tag = 'smem constant byte address 0x4 - core index']
  #allocation1 [shape = 'u32[144,128]{1,0:T(1,128)}', space=vmem, size = 0x12000, scoped, tag = 'internal scratch']
  %s0 = inlined_call_operand.hbm [shape: f32[8,148], index: 0, kind: input, shape index: {}]
  %s1 = inlined_call_operand.hbm [shape: f32[8,148], index: 1, kind: input, shape index: {}]
  %s2 = inlined_call_operand.hbm [shape: f32[1,148], index: 2, kind: output, shape index: {}]
  %s3 = sld [smem:[#allocation0]]
  $region34: #{tpu_custom_call.1} parent=0
    _
  %s5 = ssub.s32 1, %s3
  %s6 = scalar_select 0, %s5, %s3
  $region1: #{tpu_custom_call.1} parent=0
    #allocation2 [shape = 'u8[8192]{0}', space=vmem, size = 0x2000, scoped, tag = 'input window, operand 0, single buffered']
    #allocation3 [shape = 's32[1]{0}', space=sflag, size = 0x4, scoped, tag = 'scoped memory for tpu_custom_call.1']
    #allocation4 [shape = 's32[1]{0}', space=sflag, size = 0x4, scoped, tag = 'scoped memory for tpu_custom_call.1']
    #allocation5 [shape = 'u8[8192]{0}', space=vmem, size = 0x2000, scoped, tag = 'input window, operand 1, single buffered']
    #allocation6 [shape = 's32[1]{0}', space=sflag, size = 0x4, scoped, tag = 'scoped memory for tpu_custom_call.1']
    #allocation7 [shape = 'u8[1024]{0}', space=vmem, size = 0x400, scoped, tag = 'output window, operand 0, single buffered']
    %7 = vsyncpa [#allocation3], 0
    %8 = vsyncpa [#allocation6], 0
    %9 = vsyncpa [#allocation4], 0
    // Predicated region
    $region2: #{tpu_custom_call.1} parent=1 // pred_check
      _
    $region3: #{tpu_custom_call.1} parent=1 // pred_check_branch
      %11 = sbr.rel (0) target = $region5
    $region4: #{tpu_custom_call.1} parent=1 // pred_region
      %s13 = ssub.s32 256, 256
      %14 = vsyncadd [#allocation3], %s13
      %s16 = sshll.u32 [#allocation2], 4
      %s17 = int_to_ptr.vmem [resolvable:$true] %s16
      %19 = dma.hbm_to_vmem [thread:$0]  %s0, 256, %s17, [#allocation3]
    $region5: #{tpu_custom_call.1} parent=1 // pred_fallthru
      _
    // Predicated region
    $region6: #{tpu_custom_call.1} parent=1 // pred_check
      _
    $region7: #{tpu_custom_call.1} parent=1 // pred_check_branch
      %21 = sbr.rel (0) target = $region9
    $region8: #{tpu_custom_call.1} parent=1 // pred_region
      %s23 = ssub.s32 256, 256
      %24 = vsyncadd [#allocation6], %s23
      %s26 = sshll.u32 [#allocation5], 4
      %s27 = int_to_ptr.vmem [resolvable:$true] %s26
      %29 = dma.hbm_to_vmem [thread:$0]  %s1, 256, %s27, [#allocation6]
    $region9: #{tpu_custom_call.1} parent=1 // pred_fallthru
      _
    // Predicated region
    $region10: #{tpu_custom_call.1} parent=1 // pred_check
      _
    $region11: #{tpu_custom_call.1} parent=1 // pred_check_branch
      %31 = sbr.rel (0) target = $region13
    $region12: #{tpu_custom_call.1} parent=1 // pred_region
      %32 = dma.done [#allocation3], 256
    $region13: #{tpu_custom_call.1} parent=1 // pred_fallthru
      _
    // Predicated region
    $region14: #{tpu_custom_call.1} parent=1 // pred_check
      _
    $region15: #{tpu_custom_call.1} parent=1 // pred_check_branch
      %34 = sbr.rel (0) target = $region17
    $region16: #{tpu_custom_call.1} parent=1 // pred_region
      %35 = dma.done [#allocation6], 256
    $region17: #{tpu_custom_call.1} parent=1 // pred_fallthru
      _
    %p36 = scmp.eq.s32.totalorder 0, 0
    // Predicated region
    $region18: #{tpu_custom_call.1} parent=1 // pred_check
      %p37 = pneg %p36
    $region19: #{tpu_custom_call.1} parent=1 // pred_check_branch
      %39 = sbr.rel (%p37) target = $region21
    $region20: #{tpu_custom_call.1} parent=1 // pred_region
      %v40 = vlaneseq
      %vm41 = vcmp.ge.s32.totalorder %v40, 0
      %vm42 = vcmp.lt.s32.totalorder %v40, 256
      %vm43 = vmand %vm41, %vm42
      %44 = vst.msk [vmem:[#allocation7] sm:$0x3] %vm43, 0.0
    $region21: #{tpu_custom_call.1} parent=1 // pred_fallthru
      _
    %v45 = vld [vmem:[#allocation2] sm:$0xff]
    %v46 = vld [vmem:[#allocation2 + $0x8] sm:$0xff]
    %v47 = vld [vmem:[#allocation5] sm:$0xff]
    %v48 = vld [vmem:[#allocation5 + $0x8] sm:$0xff]
    %v49 = vsub.f32 1.0, %v45
    %v50 = vsub.f32 1.0, %v46
    %v51 = vmax.f32 %v49, 0.0
    %v52 = vmax.f32 %v50, 0.0
    %v53 = vmul.f32 %v47, %v45
    %v54 = vmul.f32 %v48, %v46
    %v55 = vmul.f32 %v53, %v45
    %v56 = vmul.f32 %v54, %v46
    %v57 = vsub.f32 1.0, %v47
    %v58 = vsub.f32 1.0, %v48
    %v59 = vmul.f32 %v57, %v51
    %v60 = vmul.f32 %v58, %v52
    %v61 = vmul.f32 %v59, %v51
    %v62 = vmul.f32 %v60, %v52
    %v63 = vadd.f32 %v55, %v61
    %v64 = vadd.f32 %v56, %v62
    %v65 = vld [vmem:[#allocation7] sm:$0x3]
    %v66 = vrot.slane %v63, 4
    %v67 = vadd.f32 %v63, %v66
    %v68 = vrot.slane %v67, 2
    %v69 = vadd.f32 %v67, %v68
    %v70 = vrot.slane %v69, 1
    %v71 = vadd.f32 %v69, %v70
    %v72 = vrot.slane %v64, 4
    %v73 = vadd.f32 %v64, %v72
    %v74 = vrot.slane %v73, 2
    %v75 = vadd.f32 %v73, %v74
    %v76 = vrot.slane %v75, 1
    %v77 = vadd.f32 %v75, %v76
    %v80 = vcombine.low %v71, %v77
    %v82 = vunpack.c.l.s4 1966171168
    %v83 = vunpack.c.0.s8 %v82
    %v84 = vlaneseq
    %v85 = vshrl.u32 %v84, 7
    %v86 = vsub.s32 %v83, %v85
    %v87 = vrot.slane %v80, %v86
    %v89 = vunpack.c.l.s4 1966171168
    %v90 = vunpack.c.0.s8 %v89
    %v91 = vlaneseq
    %v92 = vshrl.u32 %v91, 7
    %v93 = vsub.s32 %v90, %v92
    %v94 = vrot.slane %v87, %v93
    %v96 = vadd.f32 %v65, %v94
    %v97 = vlaneseq
    %vm98 = vcmp.ge.s32.totalorder %v97, 0
    %vm99 = vcmp.lt.s32.totalorder %v97, 256
    %vm100 = vmand %vm98, %vm99
    %101 = vst.msk [vmem:[#allocation7] sm:$0x3] %vm100, %v96
    // Predicated region
    $region22: #{tpu_custom_call.1} parent=1 // pred_check
      %p102 = pneg %p36
    $region23: #{tpu_custom_call.1} parent=1 // pred_check_branch
      %104 = sbr.rel (%p102) target = $region25
    $region24: #{tpu_custom_call.1} parent=1 // pred_region
      %v105 = vld [vmem:[#allocation7] sm:$0x3]
      %v106 = vmul.f32 %v105, 0.125
      %107 = vst.msk [vmem:[#allocation7] sm:$0x3] %vm100, %v106
    $region25: #{tpu_custom_call.1} parent=1 // pred_fallthru
      _
    // Predicated region
    $region26: #{tpu_custom_call.1} parent=1 // pred_check
      _
    $region27: #{tpu_custom_call.1} parent=1 // pred_check_branch
      %109 = sbr.rel (0) target = $region29
    $region28: #{tpu_custom_call.1} parent=1 // pred_region
      %s111 = ssub.s32 32, 32
      %112 = vsyncadd [#allocation4], %s111
      %s114 = sshll.u32 [#allocation7], 4
      %s115 = int_to_ptr.vmem [resolvable:$true] %s114
      %117 = dma.vmem_to_hbm [thread:$0]  %s115, 32, %s2, [#allocation4]
    $region29: #{tpu_custom_call.1} parent=1 // pred_fallthru
      _
    // Predicated region
    $region30: #{tpu_custom_call.1} parent=1 // pred_check
      _
    $region31: #{tpu_custom_call.1} parent=1 // pred_check_branch
      %119 = sbr.rel (0) target = $region33
    $region32: #{tpu_custom_call.1} parent=1 // pred_region
      %120 = dma.done [#allocation4], 32
    $region33: #{tpu_custom_call.1} parent=1 // pred_fallthru
      _
    %121 = vsyncpa [#allocation3], 1
    %122 = vsyncpa [#allocation6], 1
    %123 = vsyncpa [#allocation4], 1

</llo_original>
